<compile_context>
chip_gen: v5e
topology: v5e:2x2
jax: 0.10.0
libtpu: 0.0.40
codegen_flags: <defaults>
</compile_context>

<pallas_src>
import inspect

import numpy as np
import jax
import jax.numpy as jnp
from jax.experimental import pallas as pl
from jax.experimental.pallas import tpu as pltpu

LANE = 128                  # TPU lane width (vreg last-dim width)
_VMEM_SOFT_CAP = 48 << 20   # safe per-TC budget on v7x (64 MiB); v5e/v6e can go higher

# pipeline_mode=pl.Buffered(1) lets constant-index_map (resident) blocks keep a
# single VMEM buffer instead of the default double buffer.  Guarded so the
# script still runs cleanly on JAX versions without the kwarg.
try:
    _HAS_BUFFERED = (hasattr(pl, "Buffered")
                     and "pipeline_mode" in inspect.signature(pl.BlockSpec).parameters)
except (TypeError, ValueError):
    _HAS_BUFFERED = False


def _cdiv(a, b):
    return -(-a // b)


def _round_up(x, m):
    return _cdiv(x, m) * m


def _pad_last(a, target):
    pad = target - a.shape[-1]
    if pad == 0:
        return a
    return jnp.pad(a, [(0, 0)] * (a.ndim - 1) + [(0, pad)])


def _pad_rows(a, target):
    pad = target - a.shape[0]
    if pad == 0:
        return a
    return jnp.pad(a, [(0, pad)] + [(0, 0)] * (a.ndim - 1))


# ---------------------------------------------------------------------------
# Kernels
# ---------------------------------------------------------------------------
def _collapsed_kernel(x_ref, w_ref, b_ref, o_ref):
    # Compose(Linear, Linear) collapsed to a single affine map.
    # x is cast to the MXU operand dtype in-kernel (free under DMA) instead of
    # in a separate wrapper pass.
    x = x_ref[...].astype(w_ref.dtype)
    y = jnp.dot(x, w_ref[...], preferred_element_type=jnp.float32) + b_ref[...]
    o_ref[...] = y.astype(o_ref.dtype)


def _fused_kernel(x_ref, w1_ref, b1_ref, w2_ref, b2_ref, o_ref):
    # Fallback: second(first(x)) fused; the intermediate h never leaves
    # vregs/VMEM.  Bias adds / epilogue stay f32; only MXU operands are cast.
    x = x_ref[...].astype(w1_ref.dtype)
    h = jnp.dot(x, w1_ref[...], preferred_element_type=jnp.float32) + b1_ref[...]
    y = jnp.dot(h.astype(w2_ref.dtype), w2_ref[...],
                preferred_element_type=jnp.float32) + b2_ref[...]
    o_ref[...] = y.astype(o_ref.dtype)


# ---------------------------------------------------------------------------
# One-time parameter preparation (hoisted out of the per-call forward path)
# ---------------------------------------------------------------------------
def prepare_compose(w1_t, b1, w2_t, b2, *,
                    collapse="auto",
                    compute_dtype=jnp.bfloat16,
                    lane_pad_hidden=True):
    """Precompute the Compose(Linear, Linear) parameters ONCE.

    w1_t: [D_IN, H]  (first.weight.T)    b1: [H] or [1, H]
    w2_t: [H, D_OUT] (second.weight.T)   b2: [D_OUT] or [1, D_OUT]
    """
    # TODO(synk): Compose can wrap arbitrary e3psi submodules; only the
    # Linear∘Linear instantiation is implemented.  The algebraic collapse is
    # valid only when both submodules are affine (and is exact in math, but
    # W_eff is quantized once to compute_dtype — validate per model).
    D_IN, H = w1_t.shape
    D_OUT = w2_t.shape[1]
    b1 = jnp.reshape(b1, (1, H)).astype(jnp.float32)
    b2 = jnp.reshape(b2, (1, D_OUT)).astype(jnp.float32)

    if collapse == "auto":
        # Collapse only when it does not inflate MXU flops / HBM bytes,
        # i.e. the hidden dim H is not a narrow bottleneck.
        collapse = D_IN * D_OUT <= D_IN * H + H * D_OUT

    # Lane padding of the output columns only for large, ragged D_OUT.  Small
    # D_OUT (< 128) stays unpadded: masked stores cost less than the column
    # write amplification + post-call depad copy on this memory-bound kernel.
    d_out_k = _round_up(D_OUT, LANE) if D_OUT > LANE else D_OUT

    if collapse:
        # y = x @ (W1ᵀ W2ᵀ) + (b1 W2ᵀ + b2), formed once in f32.
        w_eff = jnp.dot(w1_t.astype(jnp.float32), w2_t.astype(jnp.float32))
        b_eff = jnp.dot(b1, w2_t.astype(jnp.float32)) + b2
        w_eff = _pad_last(w_eff, d_out_k).astype(compute_dtype)
        b_eff = _pad_last(b_eff, d_out_k)          # bias / epilogue stay f32
        params = (w_eff, b_eff)
        mode = "collapsed"
    else:
        # Zero-pad H to a lane multiple (exact) so h is lane-dense and the
        # second matmul's K is 128-aligned.
        h_k = _round_up(H, LANE) if lane_pad_hidden else H
        w1_p = _pad_last(w1_t, h_k).astype(compute_dtype)
        b1_p = _pad_last(b1, h_k)
        w2_p = _pad_last(_pad_rows(w2_t, h_k), d_out_k).astype(compute_dtype)
        b2_p = _pad_last(b2, d_out_k)
        params = (w1_p, b1_p, w2_p, b2_p)
        mode = "fused"

    return dict(mode=mode, params=params,
                d_in=D_IN, d_out=D_OUT, d_out_kernel=d_out_k)


# ---------------------------------------------------------------------------
# Per-call forward (only the pallas_call)
# ---------------------------------------------------------------------------
def compose_forward(x, prepared, *,
                    batch_tile=512,
                    out_dtype=jnp.bfloat16,
                    vmem_limit_bytes=None):
    """Forward of Compose: second(first(x)).  x: [B, D_IN] -> [B, D_OUT]."""
    B, D_IN = x.shape
    assert D_IN == prepared["d_in"]
    d_out = prepared["d_out"]
    d_out_k = prepared["d_out_kernel"]
    params = prepared["params"]

    # Batch tile: round to the sublane packing of x's dtype and minimize ragged
    # padding; the last (partial) grid step is masked by Pallas, so no row pad
    # and no post-call row slice.  B > batch_tile => >= 2 grid steps so both
    # v7x TensorCores get work via dimension_semantics=("parallel",).
    sublane = max(8, 32 // x.dtype.itemsize)
    n_tiles = max(1, _cdiv(B, batch_tile))
    bt = min(_round_up(_cdiv(B, n_tiles), sublane), _round_up(B, sublane))
    grid = (_cdiv(B, bt),)

    x_spec = pl.BlockSpec((bt, D_IN), lambda i: (i, 0))
    o_spec = pl.BlockSpec((bt, d_out_k), lambda i: (i, 0))
    out_shape = jax.ShapeDtypeStruct((B, d_out_k), out_dtype)

    if vmem_limit_bytes is None:
        resident_bytes = sum(int(p.size) * p.dtype.itemsize for p in params)
        stream_bytes = 2 * bt * (D_IN * x.dtype.itemsize
                                 + d_out_k * np.dtype(out_dtype).itemsize)
        vmem_limit_bytes = min(_VMEM_SOFT_CAP,
                               max(32 << 20, 2 * (resident_bytes + stream_bytes)))

    cparams = pltpu.CompilerParams(
        dimension_semantics=("parallel",),   # shard batch tiles across TCs (v7x)
        vmem_limit_bytes=vmem_limit_bytes,
    )

    kernel = _collapsed_kernel if prepared["mode"] == "collapsed" else _fused_kernel

    def _call(single_buffer_resident):
        if single_buffer_resident:
            resident = lambda a: pl.BlockSpec(a.shape, lambda i: (0, 0),
                                              pipeline_mode=pl.Buffered(1))
        else:
            resident = lambda a: pl.BlockSpec(a.shape, lambda i: (0, 0))
        return pl.pallas_call(
            kernel,
            out_shape=out_shape,
            grid=grid,
            in_specs=[x_spec] + [resident(p) for p in params],
            out_specs=o_spec,
            compiler_params=cparams,
        )(x, *params)

    if _HAS_BUFFERED:
        try:
            out = _call(True)
        except Exception:        # conservative fallback if Buffered(1) rejected
            out = _call(False)
    else:
        out = _call(False)

    if d_out_k != d_out:
        # TODO(synk): when composed into a larger pipeline, hand the lane-padded
        # slab to the consumer instead of paying this depad copy.
        out = out[:, :d_out]
    return out


if __name__ == "__main__":
    B, D_IN, HIDDEN, D_OUT = 8, 32, 64, 16

    key = jax.random.PRNGKey(0)
    kx, kw1, kb1, kw2, kb2 = jax.random.split(key, 5)

    x = jax.random.normal(kx, (B, D_IN), dtype=jnp.float32)
    # PyTorch Linear stores weight as [out, in].
    w1 = jax.random.normal(kw1, (HIDDEN, D_IN), dtype=jnp.float32) * 0.1
    b1 = jax.random.normal(kb1, (HIDDEN,), dtype=jnp.float32) * 0.1
    w2 = jax.random.normal(kw2, (D_OUT, HIDDEN), dtype=jnp.float32) * 0.1
    b2 = jax.random.normal(kb2, (D_OUT,), dtype=jnp.float32) * 0.1

    # Pure-JAX reference of Compose.forward: second(first(x))
    ref = (x @ w1.T + b1) @ w2.T + b2

    # 1) collapsed path (auto-gated), f32 operands + f32 output (tight check).
    prep_f32 = prepare_compose(w1.T, b1, w2.T, b2,
                               collapse="auto", compute_dtype=jnp.float32)
    assert prep_f32["mode"] == "collapsed"
    out_f32 = jax.block_until_ready(
        compose_forward(x, prep_f32, out_dtype=jnp.float32))
    assert out_f32.shape == (B, D_OUT)
    assert jnp.allclose(out_f32, ref, atol=1e-4, rtol=1e-4)

    # 2) collapsed path, bf16 MXU operands + bf16 output (production config).
    prep_bf16 = prepare_compose(w1.T, b1, w2.T, b2,
                                collapse="auto", compute_dtype=jnp.bfloat16)
    out_bf16 = jax.block_until_ready(
        compose_forward(x, prep_bf16, out_dtype=jnp.bfloat16))
    assert out_bf16.shape == (B, D_OUT)
    assert jnp.allclose(out_bf16.astype(jnp.float32), ref, atol=3e-2, rtol=3e-2)

    # 3) fused two-matmul fallback (non-collapsible / bottlenecked H).
    prep_fused = prepare_compose(w1.T, b1, w2.T, b2,
                                 collapse=False, compute_dtype=jnp.bfloat16)
    assert prep_fused["mode"] == "fused"
    out_fused = jax.block_until_ready(
        compose_forward(x, prep_fused, out_dtype=jnp.float32))
    assert out_fused.shape == (B, D_OUT)
    assert jnp.allclose(out_fused, ref, atol=3e-2, rtol=3e-2)

    print("KERNEL_OK")
</pallas_src>

<mosaic_0001>
module attributes {stable_mosaic.version = 11 : i64} {
  func.func @_collapsed_kernel(%arg0: i32, %arg1: memref<8x32xf32, #tpu.memory_space<vmem>>, %arg2: memref<32x16xf32, #tpu.memory_space<vmem>>, %arg3: memref<1x16xf32, #tpu.memory_space<vmem>>, %arg4: memref<8x16xf32, #tpu.memory_space<vmem>>) attributes {dimension_semantics = [#tpu.dimension_semantics<parallel>], iteration_bounds = array<i64: 1>, scalar_prefetch = 0 : i64, scratch_operands = 0 : i64, tpu.core_type = #tpu.core_type<tc>, window_params = [{transform_indices = @transform_0, window_bounds = array<i64: 8, 32>}, {pipeline_mode = #tpu.pipeline_mode<synchronous>, transform_indices = @transform_1, window_bounds = array<i64: 32, 16>}, {pipeline_mode = #tpu.pipeline_mode<synchronous>, transform_indices = @transform_2, window_bounds = array<i64: 1, 16>}, {transform_indices = @transform_3, window_bounds = array<i64: 8, 16>}]} {
    %c0 = arith.constant 0 : index
    %c0_0 = arith.constant 0 : index
    %0 = vector.load %arg1[%c0, %c0_0] : memref<8x32xf32, #tpu.memory_space<vmem>>, vector<8x32xf32>
    %c0_1 = arith.constant 0 : index
    %c0_2 = arith.constant 0 : index
    %1 = vector.load %arg2[%c0_1, %c0_2] : memref<32x16xf32, #tpu.memory_space<vmem>>, vector<32x16xf32>
    %cst = arith.constant dense<0.000000e+00> : vector<8x16xf32>
    %2 = tpu.matmul %0, %1, %cst {dimension_numbers = #tpu.dot_dimension_numbers<[1], [0], [0], [1], [0, 0, 1, 1], [], []>} : vector<8x32xf32>, vector<32x16xf32>, vector<8x16xf32> -> vector<8x16xf32>
    %c0_3 = arith.constant 0 : index
    %c0_4 = arith.constant 0 : index
    %3 = vector.load %arg3[%c0_3, %c0_4] : memref<1x16xf32, #tpu.memory_space<vmem>>, vector<1x16xf32>
    %4 = vector.broadcast %3 : vector<1x16xf32> to vector<8x16xf32>
    %5 = arith.addf %2, %4 : vector<8x16xf32>
    %c0_5 = arith.constant 0 : index
    %c0_6 = arith.constant 0 : index
    %6 = vector.load %arg4[%c0_5, %c0_6] : memref<8x16xf32, #tpu.memory_space<vmem>>, vector<8x16xf32>
    tpu.vector_store %arg4[%c0_5, %c0_6], %5 {strides = array<i32>} : memref<8x16xf32, #tpu.memory_space<vmem>>, vector<8x16xf32>,
    return
  }
  func.func @transform_0(%arg0: i32) -> (i32, i32) {
    %c0_i32 = arith.constant 0 : i32
    %c0_i32_0 = arith.constant 0 : i32
    return %arg0, %c0_i32 : i32, i32
  }
  func.func @transform_1(%arg0: i32) -> (i32, i32) {
    %c0_i32 = arith.constant 0 : i32
    %c0_i32_0 = arith.constant 0 : i32
    %c0_i32_1 = arith.constant 0 : i32
    return %c0_i32, %c0_i32_0 : i32, i32
  }
  func.func @transform_2(%arg0: i32) -> (i32, i32) {
    %c0_i32 = arith.constant 0 : i32
    %c0_i32_0 = arith.constant 0 : i32
    %c0_i32_1 = arith.constant 0 : i32
    return %c0_i32, %c0_i32_0 : i32, i32
  }
  func.func @transform_3(%arg0: i32) -> (i32, i32) {
    %c0_i32 = arith.constant 0 : i32
    %c0_i32_0 = arith.constant 0 : i32
    return %arg0, %c0_i32 : i32, i32
  }
}

module attributes {stable_mosaic.version = 11 : i64} {
  func.func @_collapsed_kernel(%arg0: i32, %arg1: memref<8x32xf32, #tpu.memory_space<vmem>>, %arg2: memref<32x16xf32, #tpu.memory_space<vmem>>, %arg3: memref<1x16xf32, #tpu.memory_space<vmem>>, %arg4: memref<8x16xf32, #tpu.memory_space<vmem>>) attributes {dimension_semantics = [#tpu.dimension_semantics<parallel>], iteration_bounds = array<i64: 1>, scalar_prefetch = 0 : i64, scratch_operands = 0 : i64, tpu.core_type = #tpu.core_type<tc>, window_params = [{transform_indices = @transform_0, window_bounds = array<i64: 8, 32>}, {pipeline_mode = #tpu.pipeline_mode<synchronous>, transform_indices = @transform_1, window_bounds = array<i64: 32, 16>}, {pipeline_mode = #tpu.pipeline_mode<synchronous>, transform_indices = @transform_2, window_bounds = array<i64: 1, 16>}, {transform_indices = @transform_3, window_bounds = array<i64: 8, 16>}]} {
    %c0 = arith.constant 0 : index
    %c0_0 = arith.constant 0 : index
    %0 = vector.load %arg1[%c0, %c0_0] : memref<8x32xf32, #tpu.memory_space<vmem>>, vector<8x32xf32>
    %c0_1 = arith.constant 0 : index
    %c0_2 = arith.constant 0 : index
    %1 = vector.load %arg2[%c0_1, %c0_2] : memref<32x16xf32, #tpu.memory_space<vmem>>, vector<32x16xf32>
    %cst = arith.constant dense<0.000000e+00> : vector<8x16xf32>
    %2 = tpu.matmul %0, %1, %cst {dimension_numbers = #tpu.dot_dimension_numbers<[1], [0], [0], [1], [0, 0, 1, 1], [], []>} : vector<8x32xf32>, vector<32x16xf32>, vector<8x16xf32> -> vector<8x16xf32>
    %c0_3 = arith.constant 0 : index
    %c0_4 = arith.constant 0 : index
    %3 = vector.load %arg3[%c0_3, %c0_4] : memref<1x16xf32, #tpu.memory_space<vmem>>, vector<1x16xf32>
    %4 = vector.broadcast %3 : vector<1x16xf32> to vector<8x16xf32>
    %5 = arith.addf %2, %4 : vector<8x16xf32>
    %c0_5 = arith.constant 0 : index
    %c0_6 = arith.constant 0 : index
    %6 = vector.load %arg4[%c0_5, %c0_6] : memref<8x16xf32, #tpu.memory_space<vmem>>, vector<8x16xf32>
    tpu.vector_store %arg4[%c0_5, %c0_6], %5 {strides = array<i32>} : memref<8x16xf32, #tpu.memory_space<vmem>>, vector<8x16xf32>,
    return
  }
  func.func @transform_0(%arg0: i32) -> (i32, i32) {
    %c0_i32 = arith.constant 0 : i32
    %c0_i32_0 = arith.constant 0 : i32
    return %arg0, %c0_i32 : i32, i32
  }
  func.func @transform_1(%arg0: i32) -> (i32, i32) {
    %c0_i32 = arith.constant 0 : i32
    %c0_i32_0 = arith.constant 0 : i32
    %c0_i32_1 = arith.constant 0 : i32
    return %c0_i32, %c0_i32_0 : i32, i32
  }
  func.func @transform_2(%arg0: i32) -> (i32, i32) {
    %c0_i32 = arith.constant 0 : i32
    %c0_i32_0 = arith.constant 0 : i32
    %c0_i32_1 = arith.constant 0 : i32
    return %c0_i32, %c0_i32_0 : i32, i32
  }
  func.func @transform_3(%arg0: i32) -> (i32, i32) {
    %c0_i32 = arith.constant 0 : i32
    %c0_i32_0 = arith.constant 0 : i32
    return %arg0, %c0_i32 : i32, i32
  }
}

</mosaic_0001>

<llo_original>
// kernel: tpu_custom_call.1
$region0: #{tpu_custom_call.1}
  #allocation0 [shape = 'u32[]', space=smem, size = 0x4, offset = 0x4, fixed_abs, tag = 'smem constant byte address 0x4 - core index']
  #allocation1 [shape = 'u32[72,128]{1,0:T(1,128)}', space=vmem, size = 0x9000, scoped, tag = 'internal scratch']
  %s0 = inlined_call_operand.vmem [shape: f32[8,32], index: 0, kind: input, shape index: {}]
  %s1 = inlined_call_operand.vmem [shape: f32[32,16], index: 1, kind: input, shape index: {}]
  %s2 = inlined_call_operand.vmem [shape: f32[1,16], index: 2, kind: input, shape index: {}]
  %s3 = inlined_call_operand.hbm [shape: f32[8,16], index: 3, kind: output, shape index: {}]
  %s4 = sld [smem:[#allocation0]]
  $region22: #{tpu_custom_call.1} parent=0
    _
  %s6 = ssub.s32 1, %s4
  %s7 = scalar_select 0, %s6, %s4
  $region1: #{tpu_custom_call.1} parent=0
    #allocation2 [shape = 'u8[4096]{0}', space=vmem, size = 0x1000, scoped, tag = 'output window, operand 0, single buffered']
    #allocation3 [shape = 's32[1]{0}', space=sflag, size = 0x4, scoped, tag = 'scoped memory for tpu_custom_call.1']
    %8 = vsyncpa [#allocation3], 0
    // Predicated region
    $region2: #{tpu_custom_call.1} parent=1 // pred_check
      _
    $region3: #{tpu_custom_call.1} parent=1 // pred_check_branch
      %10 = sbr.rel (0) target = $region5
    $region4: #{tpu_custom_call.1} parent=1 // pred_region
      _
    $region5: #{tpu_custom_call.1} parent=1 // pred_fallthru
      _
    // Predicated region
    $region6: #{tpu_custom_call.1} parent=1 // pred_check
      _
    $region7: #{tpu_custom_call.1} parent=1 // pred_check_branch
      %12 = sbr.rel (0) target = $region9
    $region8: #{tpu_custom_call.1} parent=1 // pred_region
      _
    $region9: #{tpu_custom_call.1} parent=1 // pred_fallthru
      _
    // Predicated region
    $region10: #{tpu_custom_call.1} parent=1 // pred_check
      _
    $region11: #{tpu_custom_call.1} parent=1 // pred_check_branch
      %14 = sbr.rel (0) target = $region13
    $region12: #{tpu_custom_call.1} parent=1 // pred_region
      _
    $region13: #{tpu_custom_call.1} parent=1 // pred_fallthru
      _
    %v15 = vld [vmem:[%s0] sm:$0xff]
    %v16 = vld [vmem:[%s1] sm:$0xff]
    %v17 = vld [vmem:[%s1 + $0x8] sm:$0xff]
    %v18 = vld [vmem:[%s1 + $0x10] sm:$0xff]
    %v19 = vld [vmem:[%s1 + $0x18] sm:$0xff]
    %v20 = vld [vmem:[%s2] sm:$0x1]
    %v22 = vperm.slane %v20, 0
    %vm24 = vcmask 261120
    %v26 = vsel %vm24, %v15, 0
    %28 = vmatpush.msra.mxu0 0.0
    %29 = vmatpush.msra.mxu0 0.0
    %30 = vmatpush.msra.mxu0 0.0
    %31 = vmatpush.msra.mxu0 0.0
    %32 = vmatpush.msra.mxu0 0.0
    %33 = vmatpush.msra.mxu0 0.0
    %34 = vmatpush.msra.mxu0 0.0
    %35 = vmatpush.msra.mxu0 0.0
    %36 = vmatpush.msra.mxu0 0.0
    %37 = vmatpush.msra.mxu0 0.0
    %38 = vmatpush.msra.mxu0 0.0
    %39 = vmatpush.msra.mxu0 0.0
    %40 = vmatpush.msra.mxu0 %v19
    %41 = vmatpush.msra.mxu0 %v18
    %42 = vmatpush.msra.mxu0 %v17
    %43 = vmatpush.msra.mxu0 %v16
    %44 = vmatmul.f32.gmra.mxu0 %v26
    %v45 = vpop.f32.mrf.mxu0
    %v46 = vadd.f32 %v22, %v45
    %47 = vdwg.mxu0
    %vm48 = vcmask 130048
    %49 = vst.msk [vmem:[#allocation2] sm:$0xff] %vm48, %v46
    // Predicated region
    $region14: #{tpu_custom_call.1} parent=1 // pred_check
      _
    $region15: #{tpu_custom_call.1} parent=1 // pred_check_branch
      %51 = sbr.rel (0) target = $region17
    $region16: #{tpu_custom_call.1} parent=1 // pred_region
      %53 = vsyncadd [#allocation3], 0
      %s55 = sshll.u32 [#allocation2], 4
      %s56 = int_to_ptr.vmem [resolvable:$true] %s55
      %s57 = sshll.u32 %s3, 4
      %s58 = int_to_ptr.hbm [resolvable:$true] %s57
      %60 = dma.vmem_to_hbm [thread:$0]  %s56, 128, %s58, [#allocation3]
    $region17: #{tpu_custom_call.1} parent=1 // pred_fallthru
      _
    // Predicated region
    $region18: #{tpu_custom_call.1} parent=1 // pred_check
      _
    $region19: #{tpu_custom_call.1} parent=1 // pred_check_branch
      %62 = sbr.rel (0) target = $region21
    $region20: #{tpu_custom_call.1} parent=1 // pred_region
      %64 = dma.done [#allocation3], 128
    $region21: #{tpu_custom_call.1} parent=1 // pred_fallthru
      _
    %65 = vsyncpa [#allocation3], 1

// kernel: tpu_custom_call.1
$region0: #{tpu_custom_call.1}
  #allocation0 [shape = 'u32[]', space=smem, size = 0x4, offset = 0x4, fixed_abs, tag = 'smem constant byte address 0x4 - core index']
  #allocation1 [shape = 'u32[72,128]{1,0:T(1,128)}', space=vmem, size = 0x9000, scoped, tag = 'internal scratch']
  %s0 = inlined_call_operand.vmem [shape: f32[8,32], index: 0, kind: input, shape index: {}]
  %s1 = inlined_call_operand.vmem [shape: f32[32,16], index: 1, kind: input, shape index: {}]
  %s2 = inlined_call_operand.vmem [shape: f32[1,16], index: 2, kind: input, shape index: {}]
  %s3 = inlined_call_operand.hbm [shape: f32[8,16], index: 3, kind: output, shape index: {}]
  %s4 = sld [smem:[#allocation0]]
  $region22: #{tpu_custom_call.1} parent=0
    _
  %s6 = ssub.s32 1, %s4
  %s7 = scalar_select 0, %s6, %s4
  $region1: #{tpu_custom_call.1} parent=0
    #allocation2 [shape = 'u8[4096]{0}', space=vmem, size = 0x1000, scoped, tag = 'output window, operand 0, single buffered']
    #allocation3 [shape = 's32[1]{0}', space=sflag, size = 0x4, scoped, tag = 'scoped memory for tpu_custom_call.1']
    %8 = vsyncpa [#allocation3], 0
    // Predicated region
    $region2: #{tpu_custom_call.1} parent=1 // pred_check
      _
    $region3: #{tpu_custom_call.1} parent=1 // pred_check_branch
      %10 = sbr.rel (0) target = $region5
    $region4: #{tpu_custom_call.1} parent=1 // pred_region
      _
    $region5: #{tpu_custom_call.1} parent=1 // pred_fallthru
      _
    // Predicated region
    $region6: #{tpu_custom_call.1} parent=1 // pred_check
      _
    $region7: #{tpu_custom_call.1} parent=1 // pred_check_branch
      %12 = sbr.rel (0) target = $region9
    $region8: #{tpu_custom_call.1} parent=1 // pred_region
      _
    $region9: #{tpu_custom_call.1} parent=1 // pred_fallthru
      _
    // Predicated region
    $region10: #{tpu_custom_call.1} parent=1 // pred_check
      _
    $region11: #{tpu_custom_call.1} parent=1 // pred_check_branch
      %14 = sbr.rel (0) target = $region13
    $region12: #{tpu_custom_call.1} parent=1 // pred_region
      _
    $region13: #{tpu_custom_call.1} parent=1 // pred_fallthru
      _
    %v15 = vld [vmem:[%s0] sm:$0xff]
    %v16 = vld [vmem:[%s1] sm:$0xff]
    %v17 = vld [vmem:[%s1 + $0x8] sm:$0xff]
    %v18 = vld [vmem:[%s1 + $0x10] sm:$0xff]
    %v19 = vld [vmem:[%s1 + $0x18] sm:$0xff]
    %v20 = vld [vmem:[%s2] sm:$0x1]
    %v22 = vperm.slane %v20, 0
    %vm24 = vcmask 261120
    %v26 = vsel %vm24, %v15, 0
    %28 = vmatpush.msra.mxu0 0.0
    %29 = vmatpush.msra.mxu0 0.0
    %30 = vmatpush.msra.mxu0 0.0
    %31 = vmatpush.msra.mxu0 0.0
    %32 = vmatpush.msra.mxu0 0.0
    %33 = vmatpush.msra.mxu0 0.0
    %34 = vmatpush.msra.mxu0 0.0
    %35 = vmatpush.msra.mxu0 0.0
    %36 = vmatpush.msra.mxu0 0.0
    %37 = vmatpush.msra.mxu0 0.0
    %38 = vmatpush.msra.mxu0 0.0
    %39 = vmatpush.msra.mxu0 0.0
    %40 = vmatpush.msra.mxu0 %v19
    %41 = vmatpush.msra.mxu0 %v18
    %42 = vmatpush.msra.mxu0 %v17
    %43 = vmatpush.msra.mxu0 %v16
    %44 = vmatmul.f32.gmra.mxu0 %v26
    %v45 = vpop.f32.mrf.mxu0
    %v46 = vadd.f32 %v22, %v45
    %47 = vdwg.mxu0
    %vm48 = vcmask 130048
    %49 = vst.msk [vmem:[#allocation2] sm:$0xff] %vm48, %v46
    // Predicated region
    $region14: #{tpu_custom_call.1} parent=1 // pred_check
      _
    $region15: #{tpu_custom_call.1} parent=1 // pred_check_branch
      %51 = sbr.rel (0) target = $region17
    $region16: #{tpu_custom_call.1} parent=1 // pred_region
      %53 = vsyncadd [#allocation3], 0
      %s55 = sshll.u32 [#allocation2], 4
      %s56 = int_to_ptr.vmem [resolvable:$true] %s55
      %s57 = sshll.u32 %s3, 4
      %s58 = int_to_ptr.hbm [resolvable:$true] %s57
      %60 = dma.vmem_to_hbm [thread:$0]  %s56, 128, %s58, [#allocation3]
    $region17: #{tpu_custom_call.1} parent=1 // pred_fallthru
      _
    // Predicated region
    $region18: #{tpu_custom_call.1} parent=1 // pred_check
      _
    $region19: #{tpu_custom_call.1} parent=1 // pred_check_branch
      %62 = sbr.rel (0) target = $region21
    $region20: #{tpu_custom_call.1} parent=1 // pred_region
      %64 = dma.done [#allocation3], 128
    $region21: #{tpu_custom_call.1} parent=1 // pred_fallthru
      _
    %65 = vsyncpa [#allocation3], 1

</llo_original>
